<compile_context>
chip_gen: v7x
topology: tpu7x:2x2x1
jax: 0.10.0
libtpu: 0.0.40
codegen_flags: <defaults>
</compile_context>

<pallas_src>
import functools
import math

import jax
import jax.numpy as jnp
from jax.experimental import pallas as pl
from jax.experimental.pallas import tpu as pltpu


_VMEM_TILE_BUDGET = 40 * 1024 * 1024          # conservative: fits v7x (64 MiB phys.)
_VMEM_LIMIT_CAP = 56 * 1024 * 1024
_DEFAULT_RESIDENT_WEIGHT_BYTES = 16 * 1024 * 1024


def _round_up(x, m):
    return (x + m - 1) // m * m


# ---------------------------------------------------------------------------
# Kernels
# ---------------------------------------------------------------------------

def _bert_output_kernel_resident(h_ref, w_ref, b_ref, res_ref, g_ref, beta_ref,
                                 out_ref, *, eps):
    """Single grid axis over row tiles; whole (I, H) weight resident in VMEM."""
    # Dense projection on the MXU, f32 accumulation.
    x = jnp.dot(h_ref[...], w_ref[...], preferred_element_type=jnp.float32)
    # TODO(synk): nn.Dropout is identity at inference; training-time stochastic
    # masking is not implemented.
    x = x + b_ref[...].astype(jnp.float32) + res_ref[...].astype(jnp.float32)

    # LayerNorm over the hidden axis in f32; rsqrt goes to the EUP.
    mean = jnp.mean(x, axis=-1, keepdims=True)
    xc = x - mean
    var = jnp.mean(xc * xc, axis=-1, keepdims=True)
    inv = jax.lax.rsqrt(var + eps)
    y = xc * inv * g_ref[...].astype(jnp.float32) + beta_ref[...].astype(jnp.float32)

    # Single lane-dense full-width store.
    out_ref[...] = y.astype(out_ref.dtype)


def _bert_output_kernel_ksplit(h_ref, w_ref, b_ref, res_ref, g_ref, beta_ref,
                               out_ref, acc_ref, *, eps):
    """Fallback when the weight is too large for VMEM: reduce over K tiles."""
    k = pl.program_id(1)

    @pl.when(k == 0)
    def _():
        # Seed the accumulator with bias + residual: these VPU adds hide under
        # the first MXU step instead of the serial LayerNorm epilogue.
        acc_ref[...] = (res_ref[...].astype(jnp.float32)
                        + b_ref[...].astype(jnp.float32))

    acc_ref[...] += jnp.dot(h_ref[...], w_ref[...],
                            preferred_element_type=jnp.float32)

    @pl.when(k == pl.num_programs(1) - 1)
    def _():
        x = acc_ref[...]
        mean = jnp.mean(x, axis=-1, keepdims=True)
        xc = x - mean
        var = jnp.mean(xc * xc, axis=-1, keepdims=True)
        inv = jax.lax.rsqrt(var + eps)
        y = (xc * inv * g_ref[...].astype(jnp.float32)
             + beta_ref[...].astype(jnp.float32))
        out_ref[...] = y.astype(out_ref.dtype)


# ---------------------------------------------------------------------------
# VMEM footprint estimators & tile selection
# ---------------------------------------------------------------------------

def _resident_vmem_bytes(tm, I, H, x_b, w_b, o_b):
    return (2 * tm * I * x_b          # hidden tiles (double-buffered)
            + 2 * I * H * w_b         # resident weight (bounded by 2 buffers)
            + 2 * tm * H * x_b        # residual tiles
            + 2 * tm * H * o_b        # output tiles
            + 3 * 2 * 8 * H * 4)      # bias / gamma / beta (sublane-padded)


def _ksplit_vmem_bytes(tm, tk, H, x_b, w_b, o_b):
    return (2 * tm * tk * x_b
            + 2 * tk * H * w_b
            + 2 * tm * H * x_b
            + 2 * tm * H * o_b
            + tm * H * 4              # f32 accumulator scratch
            + 3 * 2 * 8 * H * 4)


def _pick_tile_m(M, fits):
    tm = min(256, _round_up(max(M, 1), 8))
    while tm > 8 and not fits(tm):
        tm = max(8, _round_up(tm // 2, 8))
    return tm


# ---------------------------------------------------------------------------
# Wrapper
# ---------------------------------------------------------------------------

def bert_output(hidden_states, input_tensor, weight, bias, gamma, beta, *,
                eps=1e-12, compute_dtype=None,
                max_resident_weight_bytes=_DEFAULT_RESIDENT_WEIGHT_BYTES,
                tk=None):
    """
    hidden_states: (B, L, I)   input_tensor: (B, L, H)
    weight: (I, H)  (transposed vs. torch Linear.weight)
    bias, gamma, beta: (H,)
    compute_dtype: optional dtype (e.g. jnp.bfloat16) for the matmul operands
        only; accumulation, bias/residual add and LayerNorm stay in f32.
    returns: (B, L, H) with input_tensor's dtype.
    """
    B, L, I = hidden_states.shape
    _, _, H = input_tensor.shape
    M = B * L
    out_dtype = input_tensor.dtype

    h2 = hidden_states.reshape(M, I)
    r2 = input_tensor.reshape(M, H)
    w2 = weight
    if compute_dtype is not None:
        h2 = h2.astype(compute_dtype)
        w2 = w2.astype(compute_dtype)
    b2 = bias.reshape(1, H)
    g2 = gamma.reshape(1, H)
    be2 = beta.reshape(1, H)

    x_b = h2.dtype.itemsize
    w_b = w2.dtype.itemsize
    o_b = input_tensor.dtype.itemsize

    cost = pl.CostEstimate(
        flops=2 * M * I * H,
        transcendentals=M,
        bytes_accessed=(M * I * x_b + M * H * o_b + I * H * w_b
                        + 3 * H * 4 + M * H * o_b))

    use_resident = (I * H * w_b <= max_resident_weight_bytes
                    and _resident_vmem_bytes(8, I, H, x_b, w_b, o_b)
                    <= _VMEM_TILE_BUDGET)

    if use_resident:
        def fits(t):
            return _resident_vmem_bytes(t, I, H, x_b, w_b, o_b) <= _VMEM_TILE_BUDGET

        tm = _pick_tile_m(M, fits)
        M_pad = _round_up(M, tm)
        if M_pad != M:
            h2 = jnp.pad(h2, ((0, M_pad - M), (0, 0)))
            r2 = jnp.pad(r2, ((0, M_pad - M), (0, 0)))

        est = _resident_vmem_bytes(tm, I, H, x_b, w_b, o_b)
        grid_spec = pltpu.PrefetchScalarGridSpec(
            num_scalar_prefetch=0,
            grid=(M_pad // tm,),
            in_specs=[
                pl.BlockSpec((tm, I), lambda m: (m, 0)),    # hidden_states
                pl.BlockSpec((I, H), lambda m: (0, 0)),     # weight (resident)
                pl.BlockSpec((1, H), lambda m: (0, 0)),     # bias
                pl.BlockSpec((tm, H), lambda m: (m, 0)),    # residual
                pl.BlockSpec((1, H), lambda m: (0, 0)),     # gamma
                pl.BlockSpec((1, H), lambda m: (0, 0)),     # beta
            ],
            out_specs=pl.BlockSpec((tm, H), lambda m: (m, 0)),
        )
        kernel = functools.partial(_bert_output_kernel_resident, eps=eps)
        dim_sem = ("parallel",)
    else:
        if tk is None:
            tk_eff = min(512, _round_up(I, 128))
        else:
            tk_eff = min(_round_up(tk, 128), _round_up(I, 128))
        I_pad = _round_up(I, tk_eff)

        def fits(t):
            return _ksplit_vmem_bytes(t, tk_eff, H, x_b, w_b, o_b) <= _VMEM_TILE_BUDGET

        tm = _pick_tile_m(M, fits)
        M_pad = _round_up(M, tm)
        if M_pad != M:
            h2 = jnp.pad(h2, ((0, M_pad - M), (0, 0)))
            r2 = jnp.pad(r2, ((0, M_pad - M), (0, 0)))
        if I_pad != I:
            h2 = jnp.pad(h2, ((0, 0), (0, I_pad - I)))
            w2 = jnp.pad(w2, ((0, I_pad - I), (0, 0)))

        est = _ksplit_vmem_bytes(tm, tk_eff, H, x_b, w_b, o_b)
        grid_spec = pltpu.PrefetchScalarGridSpec(
            num_scalar_prefetch=0,
            grid=(M_pad // tm, I_pad // tk_eff),
            in_specs=[
                pl.BlockSpec((tm, tk_eff), lambda m, k: (m, k)),  # hidden_states
                pl.BlockSpec((tk_eff, H), lambda m, k: (k, 0)),   # weight
                pl.BlockSpec((1, H), lambda m, k: (0, 0)),        # bias
                pl.BlockSpec((tm, H), lambda m, k: (m, 0)),       # residual
                pl.BlockSpec((1, H), lambda m, k: (0, 0)),        # gamma
                pl.BlockSpec((1, H), lambda m, k: (0, 0)),        # beta
            ],
            out_specs=pl.BlockSpec((tm, H), lambda m, k: (m, 0)),
            scratch_shapes=[pltpu.VMEM((tm, H), jnp.float32)],
        )
        kernel = functools.partial(_bert_output_kernel_ksplit, eps=eps)
        dim_sem = ("parallel", "arbitrary")

    vmem_limit = int(min(max(est + (8 << 20), 32 << 20), _VMEM_LIMIT_CAP))

    out2 = pl.pallas_call(
        kernel,
        out_shape=jax.ShapeDtypeStruct((M_pad, H), out_dtype),
        grid_spec=grid_spec,
        compiler_params=pltpu.CompilerParams(
            dimension_semantics=dim_sem,
            vmem_limit_bytes=vmem_limit),
        cost_estimate=cost,
    )(h2, w2, b2, r2, g2, be2)

    if M_pad != M:
        out2 = out2[:M]
    return out2.reshape(B, L, H)


def bert_output_ref(hidden_states, input_tensor, weight, bias, gamma, beta,
                    *, eps=1e-12):
    """Pure-JAX reference mirroring the PyTorch forward (eval mode)."""
    x = hidden_states @ weight + bias + input_tensor
    mean = jnp.mean(x, axis=-1, keepdims=True)
    var = jnp.mean((x - mean) ** 2, axis=-1, keepdims=True)
    return (x - mean) / jnp.sqrt(var + eps) * gamma + beta


if __name__ == "__main__":
    # Small shapes consistent with the module (intermediate=3072, hidden=768,
    # scaled down). L=19 makes B*L=38 non-tile-aligned on purpose to exercise
    # the row-padding path.
    B, L = 2, 19
    I, H = 512, 128

    key = jax.random.PRNGKey(0)
    keys = jax.random.split(key, 6)

    hidden_states = jax.random.normal(keys[0], (B, L, I), dtype=jnp.float32)
    input_tensor = jax.random.normal(keys[1], (B, L, H), dtype=jnp.float32)

    scale = 1.0 / math.sqrt(I)
    weight = jax.random.uniform(keys[2], (I, H), jnp.float32, -scale, scale)
    bias = jax.random.uniform(keys[3], (H,), jnp.float32, -scale, scale)
    gamma = 1.0 + 0.1 * jax.random.normal(keys[4], (H,), dtype=jnp.float32)
    beta = 0.1 * jax.random.normal(keys[5], (H,), dtype=jnp.float32)

    ref = bert_output_ref(hidden_states, input_tensor, weight, bias, gamma, beta)

    # Fast path: VMEM-resident weight, single grid axis, no accumulator.
    out = jax.block_until_ready(
        bert_output(hidden_states, input_tensor, weight, bias, gamma, beta))
    assert out.shape == (B, L, H)
    assert jnp.allclose(out, ref, atol=1e-4, rtol=1e-4), "resident path mismatch"

    # Fallback path: forced K-split reduction (multi-step f32 accumulator).
    out_ks = jax.block_until_ready(
        bert_output(hidden_states, input_tensor, weight, bias, gamma, beta,
                    max_resident_weight_bytes=0, tk=128))
    assert jnp.allclose(out_ks, ref, atol=1e-4, rtol=1e-4), "k-split path mismatch"

    print("KERNEL_OK")
</pallas_src>

<mosaic_0001>
module attributes {stable_mosaic.version = 11 : i64} {
  func.func @_bert_output_kernel_resident(%arg0: i32, %arg1: memref<40x512xf32, #tpu.memory_space<vmem>>, %arg2: memref<512x128xf32, #tpu.memory_space<vmem>>, %arg3: memref<1x128xf32, #tpu.memory_space<vmem>>, %arg4: memref<40x128xf32, #tpu.memory_space<vmem>>, %arg5: memref<1x128xf32, #tpu.memory_space<vmem>>, %arg6: memref<1x128xf32, #tpu.memory_space<vmem>>, %arg7: memref<40x128xf32, #tpu.memory_space<vmem>>) attributes {dimension_semantics = [#tpu.dimension_semantics<parallel>], iteration_bounds = array<i64: 1>, scalar_prefetch = 0 : i64, scratch_operands = 0 : i64, tpu.core_type = #tpu.core_type<tc>, window_params = [{transform_indices = @transform_0, window_bounds = array<i64: 40, 512>}, {pipeline_mode = #tpu.pipeline_mode<synchronous>, transform_indices = @transform_1, window_bounds = array<i64: 512, 128>}, {pipeline_mode = #tpu.pipeline_mode<synchronous>, transform_indices = @transform_2, window_bounds = array<i64: 1, 128>}, {transform_indices = @transform_3, window_bounds = array<i64: 40, 128>}, {pipeline_mode = #tpu.pipeline_mode<synchronous>, transform_indices = @transform_4, window_bounds = array<i64: 1, 128>}, {pipeline_mode = #tpu.pipeline_mode<synchronous>, transform_indices = @transform_5, window_bounds = array<i64: 1, 128>}, {transform_indices = @transform_6, window_bounds = array<i64: 40, 128>}]} {
    %c0 = arith.constant 0 : index
    %c0_0 = arith.constant 0 : index
    %0 = vector.load %arg1[%c0, %c0_0] : memref<40x512xf32, #tpu.memory_space<vmem>>, vector<40x512xf32>
    %c0_1 = arith.constant 0 : index
    %c0_2 = arith.constant 0 : index
    %1 = vector.load %arg2[%c0_1, %c0_2] : memref<512x128xf32, #tpu.memory_space<vmem>>, vector<512x128xf32>
    %cst = arith.constant dense<0.000000e+00> : vector<40x128xf32>
    %2 = tpu.matmul %0, %1, %cst {dimension_numbers = #tpu.dot_dimension_numbers<[1], [0], [0], [1], [0, 0, 1, 1], [], []>} : vector<40x512xf32>, vector<512x128xf32>, vector<40x128xf32> -> vector<40x128xf32>
    %c0_3 = arith.constant 0 : index
    %c0_4 = arith.constant 0 : index
    %3 = vector.load %arg3[%c0_3, %c0_4] : memref<1x128xf32, #tpu.memory_space<vmem>>, vector<1x128xf32>
    %4 = vector.broadcast %3 : vector<1x128xf32> to vector<40x128xf32>
    %5 = arith.addf %2, %4 : vector<40x128xf32>
    %c0_5 = arith.constant 0 : index
    %c0_6 = arith.constant 0 : index
    %6 = vector.load %arg4[%c0_5, %c0_6] : memref<40x128xf32, #tpu.memory_space<vmem>>, vector<40x128xf32>
    %7 = arith.addf %5, %6 : vector<40x128xf32>
    %cst_7 = arith.constant dense<0.000000e+00> : vector<40xf32>
    %8 = vector.multi_reduction <add>, %7, %cst_7 [1] : vector<40x128xf32> to vector<40xf32>
    %9 = vector.shape_cast %8 : vector<40xf32> to vector<40x1xf32>
    %cst_8 = arith.constant 1.280000e+02 : f32
    %10 = vector.broadcast %cst_8 : f32 to vector<40x1xf32>
    %11 = arith.divf %9, %10 : vector<40x1xf32>
    %12 = vector.broadcast %11 : vector<40x1xf32> to vector<40x128xf32>
    %13 = arith.subf %7, %12 : vector<40x128xf32>
    %14 = arith.mulf %13, %13 : vector<40x128xf32>
    %cst_9 = arith.constant dense<0.000000e+00> : vector<40xf32>
    %15 = vector.multi_reduction <add>, %14, %cst_9 [1] : vector<40x128xf32> to vector<40xf32>
    %16 = vector.shape_cast %15 : vector<40xf32> to vector<40x1xf32>
    %cst_10 = arith.constant 1.280000e+02 : f32
    %17 = vector.broadcast %cst_10 : f32 to vector<40x1xf32>
    %18 = arith.divf %16, %17 : vector<40x1xf32>
    %cst_11 = arith.constant 9.99999996E-13 : f32
    %19 = vector.broadcast %cst_11 : f32 to vector<40x1xf32>
    %20 = arith.addf %18, %19 : vector<40x1xf32>
    %21 = math.rsqrt %20 : vector<40x1xf32>
    %22 = vector.broadcast %21 : vector<40x1xf32> to vector<40x128xf32>
    %23 = arith.mulf %13, %22 : vector<40x128xf32>
    %c0_12 = arith.constant 0 : index
    %c0_13 = arith.constant 0 : index
    %24 = vector.load %arg5[%c0_12, %c0_13] : memref<1x128xf32, #tpu.memory_space<vmem>>, vector<1x128xf32>
    %25 = vector.broadcast %24 : vector<1x128xf32> to vector<40x128xf32>
    %26 = arith.mulf %23, %25 : vector<40x128xf32>
    %c0_14 = arith.constant 0 : index
    %c0_15 = arith.constant 0 : index
    %27 = vector.load %arg6[%c0_14, %c0_15] : memref<1x128xf32, #tpu.memory_space<vmem>>, vector<1x128xf32>
    %28 = vector.broadcast %27 : vector<1x128xf32> to vector<40x128xf32>
    %29 = arith.addf %26, %28 : vector<40x128xf32>
    %c0_16 = arith.constant 0 : index
    %c0_17 = arith.constant 0 : index
    %30 = vector.load %arg7[%c0_16, %c0_17] : memref<40x128xf32, #tpu.memory_space<vmem>>, vector<40x128xf32>
    tpu.vector_store %arg7[%c0_16, %c0_17], %29 {strides = array<i32>} : memref<40x128xf32, #tpu.memory_space<vmem>>, vector<40x128xf32>,
    return
  }
  func.func @transform_0(%arg0: i32) -> (i32, i32) {
    %c0_i32 = arith.constant 0 : i32
    %c0_i32_0 = arith.constant 0 : i32
    return %arg0, %c0_i32 : i32, i32
  }
  func.func @transform_1(%arg0: i32) -> (i32, i32) {
    %c0_i32 = arith.constant 0 : i32
    %c0_i32_0 = arith.constant 0 : i32
    %c0_i32_1 = arith.constant 0 : i32
    return %c0_i32, %c0_i32_0 : i32, i32
  }
  func.func @transform_2(%arg0: i32) -> (i32, i32) {
    %c0_i32 = arith.constant 0 : i32
    %c0_i32_0 = arith.constant 0 : i32
    %c0_i32_1 = arith.constant 0 : i32
    return %c0_i32, %c0_i32_0 : i32, i32
  }
  func.func @transform_3(%arg0: i32) -> (i32, i32) {
    %c0_i32 = arith.constant 0 : i32
    %c0_i32_0 = arith.constant 0 : i32
    return %arg0, %c0_i32 : i32, i32
  }
  func.func @transform_4(%arg0: i32) -> (i32, i32) {
    %c0_i32 = arith.constant 0 : i32
    %c0_i32_0 = arith.constant 0 : i32
    %c0_i32_1 = arith.constant 0 : i32
    return %c0_i32, %c0_i32_0 : i32, i32
  }
  func.func @transform_5(%arg0: i32) -> (i32, i32) {
    %c0_i32 = arith.constant 0 : i32
    %c0_i32_0 = arith.constant 0 : i32
    %c0_i32_1 = arith.constant 0 : i32
    return %c0_i32, %c0_i32_0 : i32, i32
  }
  func.func @transform_6(%arg0: i32) -> (i32, i32) {
    %c0_i32 = arith.constant 0 : i32
    %c0_i32_0 = arith.constant 0 : i32
    return %arg0, %c0_i32 : i32, i32
  }
}

</mosaic_0001>

<llo_original>
// kernel: tpu_custom_call.1
$region0: #{tpu_custom_call.1}
  #allocation0 [shape = 'u32[]', space=smem, size = 0x4, offset = 0x4, fixed_abs, tag = 'smem constant byte address 0x4 - core index']
  #allocation1 [shape = 'u32[144,128]{1,0:T(1,128)}', space=vmem, size = 0x12000, scoped, tag = 'internal scratch']
  %s0 = inlined_call_operand.hbm [shape: f32[40,512], index: 0, kind: input, shape index: {}]
  %s1 = inlined_call_operand.hbm [shape: f32[512,128], index: 1, kind: input, shape index: {}]
  %s2 = inlined_call_operand.vmem [shape: f32[1,128], index: 2, kind: input, shape index: {}]
  %s3 = inlined_call_operand.hbm [shape: f32[40,128], index: 3, kind: input, shape index: {}]
  %s4 = inlined_call_operand.vmem [shape: f32[1,128], index: 4, kind: input, shape index: {}]
  %s5 = inlined_call_operand.vmem [shape: f32[1,128], index: 5, kind: input, shape index: {}]
  %s6 = inlined_call_operand.hbm [shape: f32[40,128], index: 6, kind: output, shape index: {}]
  %s7 = sld [smem:[#allocation0]]
  $region46: #{tpu_custom_call.1} parent=0
    _
  %s9 = ssub.s32 1, %s7
  %s10 = scalar_select 0, %s9, %s7
  $region1: #{tpu_custom_call.1} parent=0
    #allocation2 [shape = 'u8[81920]{0}', space=vmem, size = 0x14000, scoped, tag = 'input window, operand 0, single buffered']
    #allocation3 [shape = 's32[1]{0}', space=sflag, size = 0x4, scoped, tag = 'scoped memory for tpu_custom_call.1']
    #allocation4 [shape = 's32[1]{0}', space=sflag, size = 0x4, scoped, tag = 'scoped memory for tpu_custom_call.1']
    #allocation5 [shape = 'u8[262144]{0}', space=vmem, size = 0x40000, scoped, tag = 'input window, operand 1, single buffered']
    #allocation6 [shape = 's32[1]{0}', space=sflag, size = 0x4, scoped, tag = 'scoped memory for tpu_custom_call.1']
    #allocation7 [shape = 'u8[20480]{0}', space=vmem, size = 0x5000, scoped, tag = 'input window, operand 3, single buffered']
    #allocation8 [shape = 'u8[20480]{0}', space=vmem, size = 0x5000, scoped, tag = 'output window, operand 0, single buffered']
    %11 = vsyncpa [#allocation3], 0
    %12 = vsyncpa [#allocation6], 0
    %13 = vsyncpa [#allocation4], 0
    // Predicated region
    $region2: #{tpu_custom_call.1} parent=1 // pred_check
      _
    $region3: #{tpu_custom_call.1} parent=1 // pred_check_branch
      %15 = sbr.rel (0) target = $region5
    $region4: #{tpu_custom_call.1} parent=1 // pred_region
      %s17 = ssub.s32 2560, 2560
      %18 = vsyncadd [#allocation3], %s17
      %s19 = sshll.u32 [#allocation2], 4
      %s20 = int_to_ptr.vmem [resolvable:$true] %s19
      %25 = dma.hbm_to_vmem [thread:$0]  %s0, 2560, %s20, [#allocation3], 512, 512, 32
    $region5: #{tpu_custom_call.1} parent=1 // pred_fallthru
      _
    // Predicated region
    $region6: #{tpu_custom_call.1} parent=1 // pred_check
      _
    $region7: #{tpu_custom_call.1} parent=1 // pred_check_branch
      %27 = sbr.rel (0) target = $region9
    $region8: #{tpu_custom_call.1} parent=1 // pred_region
      %s29 = ssub.s32 8192, 8192
      %30 = vsyncadd [#allocation6], %s29
      %s31 = sshll.u32 [#allocation5], 4
      %s32 = int_to_ptr.vmem [resolvable:$true] %s31
      %37 = dma.hbm_to_vmem [thread:$0]  %s1, 8192, %s32, [#allocation6], 128, 128, 8
    $region9: #{tpu_custom_call.1} parent=1 // pred_fallthru
      _
    // Predicated region
    $region10: #{tpu_custom_call.1} parent=1 // pred_check
      _
    $region11: #{tpu_custom_call.1} parent=1 // pred_check_branch
      %39 = sbr.rel (0) target = $region13
    $region12: #{tpu_custom_call.1} parent=1 // pred_region
      _
    $region13: #{tpu_custom_call.1} parent=1 // pred_fallthru
      _
    // Predicated region
    $region14: #{tpu_custom_call.1} parent=1 // pred_check
      _
    $region15: #{tpu_custom_call.1} parent=1 // pred_check_branch
      %41 = sbr.rel (0) target = $region17
    $region16: #{tpu_custom_call.1} parent=1 // pred_region
      %s43 = ssub.s32 640, 640
      %44 = vsyncadd [#allocation6], %s43
      %s45 = sshll.u32 [#allocation7], 4
      %s46 = int_to_ptr.vmem [resolvable:$true] %s45
      %51 = dma.hbm_to_vmem [thread:$0]  %s3, 640, %s46, [#allocation6], 128, 128, 8
    $region17: #{tpu_custom_call.1} parent=1 // pred_fallthru
      _
    // Predicated region
    $region18: #{tpu_custom_call.1} parent=1 // pred_check
      _
    $region19: #{tpu_custom_call.1} parent=1 // pred_check_branch
      %53 = sbr.rel (0) target = $region21
    $region20: #{tpu_custom_call.1} parent=1 // pred_region
      _
    $region21: #{tpu_custom_call.1} parent=1 // pred_fallthru
      _
    // Predicated region
    $region22: #{tpu_custom_call.1} parent=1 // pred_check
      _
    $region23: #{tpu_custom_call.1} parent=1 // pred_check_branch
      %55 = sbr.rel (0) target = $region25
    $region24: #{tpu_custom_call.1} parent=1 // pred_region
      _
    $region25: #{tpu_custom_call.1} parent=1 // pred_fallthru
      _
    // Predicated region
    $region26: #{tpu_custom_call.1} parent=1 // pred_check
      _
    $region27: #{tpu_custom_call.1} parent=1 // pred_check_branch
      %57 = sbr.rel (0) target = $region29
    $region28: #{tpu_custom_call.1} parent=1 // pred_region
      %58 = dma.done [#allocation3], 2560
    $region29: #{tpu_custom_call.1} parent=1 // pred_fallthru
      _
    // Predicated region
    $region30: #{tpu_custom_call.1} parent=1 // pred_check
      _
    $region31: #{tpu_custom_call.1} parent=1 // pred_check_branch
      %60 = sbr.rel (0) target = $region33
    $region32: #{tpu_custom_call.1} parent=1 // pred_region
      %61 = dma.done [#allocation6], 8192
    $region33: #{tpu_custom_call.1} parent=1 // pred_fallthru
      _
    // Predicated region
    $region34: #{tpu_custom_call.1} parent=1 // pred_check
      _
    $region35: #{tpu_custom_call.1} parent=1 // pred_check_branch
      %63 = sbr.rel (0) target = $region37
    $region36: #{tpu_custom_call.1} parent=1 // pred_region
      %64 = dma.done [#allocation6], 640
    $region37: #{tpu_custom_call.1} parent=1 // pred_fallthru
      _
    %v65 = vld [vmem:[#allocation2] sm:$0xff]
    %v66 = vld [vmem:[#allocation2 + $0x8] sm:$0xff]
    %v67 = vld [vmem:[#allocation2 + $0x10] sm:$0xff]
    %v68 = vld [vmem:[#allocation2 + $0x18] sm:$0xff]
    %v69 = vld [vmem:[#allocation2 + $0x20] sm:$0xff]
    %v70 = vld [vmem:[#allocation2 + $0x28] sm:$0xff]
    %v71 = vld [vmem:[#allocation2 + $0x30] sm:$0xff]
    %v72 = vld [vmem:[#allocation2 + $0x38] sm:$0xff]
    %v73 = vld [vmem:[#allocation2 + $0x40] sm:$0xff]
    %v74 = vld [vmem:[#allocation2 + $0x48] sm:$0xff]
    %v75 = vld [vmem:[#allocation2 + $0x50] sm:$0xff]
    %v76 = vld [vmem:[#allocation2 + $0x58] sm:$0xff]
    %v77 = vld [vmem:[#allocation2 + $0x60] sm:$0xff]
    %v78 = vld [vmem:[#allocation2 + $0x68] sm:$0xff]
    %v79 = vld [vmem:[#allocation2 + $0x70] sm:$0xff]
    %v80 = vld [vmem:[#allocation2 + $0x78] sm:$0xff]
    %v81 = vld [vmem:[#allocation2 + $0x80] sm:$0xff]
    %v82 = vld [vmem:[#allocation2 + $0x88] sm:$0xff]
    %v83 = vld [vmem:[#allocation2 + $0x90] sm:$0xff]
    %v84 = vld [vmem:[#allocation2 + $0x98] sm:$0xff]
    %v85 = vld [vmem:[#allocation5] sm:$0xff]
    %v86 = vld [vmem:[#allocation5 + $0x8] sm:$0xff]
    %v87 = vld [vmem:[#allocation5 + $0x10] sm:$0xff]
    %v88 = vld [vmem:[#allocation5 + $0x18] sm:$0xff]
    %v89 = vld [vmem:[#allocation5 + $0x20] sm:$0xff]
    %v90 = vld [vmem:[#allocation5 + $0x28] sm:$0xff]
    %v91 = vld [vmem:[#allocation5 + $0x30] sm:$0xff]
    %v92 = vld [vmem:[#allocation5 + $0x38] sm:$0xff]
    %v93 = vld [vmem:[#allocation5 + $0x40] sm:$0xff]
    %v94 = vld [vmem:[#allocation5 + $0x48] sm:$0xff]
    %v95 = vld [vmem:[#allocation5 + $0x50] sm:$0xff]
    %v96 = vld [vmem:[#allocation5 + $0x58] sm:$0xff]
    %v97 = vld [vmem:[#allocation5 + $0x60] sm:$0xff]
    %v98 = vld [vmem:[#allocation5 + $0x68] sm:$0xff]
    %v99 = vld [vmem:[#allocation5 + $0x70] sm:$0xff]
    %v100 = vld [vmem:[#allocation5 + $0x78] sm:$0xff]
    %v101 = vld [vmem:[#allocation5 + $0x80] sm:$0xff]
    %v102 = vld [vmem:[#allocation5 + $0x88] sm:$0xff]
    %v103 = vld [vmem:[#allocation5 + $0x90] sm:$0xff]
    %v104 = vld [vmem:[#allocation5 + $0x98] sm:$0xff]
    %v105 = vld [vmem:[#allocation5 + $0xa0] sm:$0xff]
    %v106 = vld [vmem:[#allocation5 + $0xa8] sm:$0xff]
    %v107 = vld [vmem:[#allocation5 + $0xb0] sm:$0xff]
    %v108 = vld [vmem:[#allocation5 + $0xb8] sm:$0xff]
    %v109 = vld [vmem:[#allocation5 + $0xc0] sm:$0xff]
    %v110 = vld [vmem:[#allocation5 + $0xc8] sm:$0xff]
    %v111 = vld [vmem:[#allocation5 + $0xd0] sm:$0xff]
    %v112 = vld [vmem:[#allocation5 + $0xd8] sm:$0xff]
    %v113 = vld [vmem:[#allocation5 + $0xe0] sm:$0xff]
    %v114 = vld [vmem:[#allocation5 + $0xe8] sm:$0xff]
    %v115 = vld [vmem:[#allocation5 + $0xf0] sm:$0xff]
    %v116 = vld [vmem:[#allocation5 + $0xf8] sm:$0xff]
    %v117 = vld [vmem:[#allocation5 + $0x100] sm:$0xff]
    %v118 = vld [vmem:[#allocation5 + $0x108] sm:$0xff]
    %v119 = vld [vmem:[#allocation5 + $0x110] sm:$0xff]
    %v120 = vld [vmem:[#allocation5 + $0x118] sm:$0xff]
    %v121 = vld [vmem:[#allocation5 + $0x120] sm:$0xff]
    %v122 = vld [vmem:[#allocation5 + $0x128] sm:$0xff]
    %v123 = vld [vmem:[#allocation5 + $0x130] sm:$0xff]
    %v124 = vld [vmem:[#allocation5 + $0x138] sm:$0xff]
    %v125 = vld [vmem:[#allocation5 + $0x140] sm:$0xff]
    %v126 = vld [vmem:[#allocation5 + $0x148] sm:$0xff]
    %v127 = vld [vmem:[#allocation5 + $0x150] sm:$0xff]
    %v128 = vld [vmem:[#allocation5 + $0x158] sm:$0xff]
    %v129 = vld [vmem:[#allocation5 + $0x160] sm:$0xff]
    %v130 = vld [vmem:[#allocation5 + $0x168] sm:$0xff]
    %v131 = vld [vmem:[#allocation5 + $0x170] sm:$0xff]
    %v132 = vld [vmem:[#allocation5 + $0x178] sm:$0xff]
    %v133 = vld [vmem:[#allocation5 + $0x180] sm:$0xff]
    %v134 = vld [vmem:[#allocation5 + $0x188] sm:$0xff]
    %v135 = vld [vmem:[#allocation5 + $0x190] sm:$0xff]
    %v136 = vld [vmem:[#allocation5 + $0x198] sm:$0xff]
    %v137 = vld [vmem:[#allocation5 + $0x1a0] sm:$0xff]
    %v138 = vld [vmem:[#allocation5 + $0x1a8] sm:$0xff]
    %v139 = vld [vmem:[#allocation5 + $0x1b0] sm:$0xff]
    %v140 = vld [vmem:[#allocation5 + $0x1b8] sm:$0xff]
    %v141 = vld [vmem:[#allocation5 + $0x1c0] sm:$0xff]
    %v142 = vld [vmem:[#allocation5 + $0x1c8] sm:$0xff]
    %v143 = vld [vmem:[#allocation5 + $0x1d0] sm:$0xff]
    %v144 = vld [vmem:[#allocation5 + $0x1d8] sm:$0xff]
    %v145 = vld [vmem:[#allocation5 + $0x1e0] sm:$0xff]
    %v146 = vld [vmem:[#allocation5 + $0x1e8] sm:$0xff]
    %v147 = vld [vmem:[#allocation5 + $0x1f0] sm:$0xff]
    %v148 = vld [vmem:[#allocation5 + $0x1f8] sm:$0xff]
    %v149 = vld [vmem:[%s2] sm:$0x1]
    %v151 = vlaneseq
    %v152 = vshrl.u32 %v151, 7
    %v153 = vsub.s32 0, %v152
    %v154 = vrot.slane %v149, %v153
    %156 = vmatprep.subr.mxu0 0.0
    %157 = vmatpush1.msra.mxu0 %v85
    %158 = vmatprep.subr.mxu0 0.0
    %159 = vmatpush1.msra.mxu0 %v86
    %160 = vmatprep.subr.mxu0 0.0
    %161 = vmatpush1.msra.mxu0 %v87
    %162 = vmatprep.subr.mxu0 0.0
    %163 = vmatpush1.msra.mxu0 %v88
    %164 = vmatprep.subr.mxu0 0.0
    %165 = vmatpush1.msra.mxu0 %v89
    %166 = vmatprep.subr.mxu0 0.0
    %167 = vmatpush1.msra.mxu0 %v90
    %168 = vmatprep.subr.mxu0 0.0
    %169 = vmatpush1.msra.mxu0 %v91
    %170 = vmatprep.subr.mxu0 0.0
    %171 = vmatpush1.msra.mxu0 %v92
    %172 = vmatprep.subr.mxu0 0.0
    %173 = vmatpush1.msra.mxu0 %v93
    %174 = vmatprep.subr.mxu0 0.0
    %175 = vmatpush1.msra.mxu0 %v94
    %176 = vmatprep.subr.mxu0 0.0
    %177 = vmatpush1.msra.mxu0 %v95
    %178 = vmatprep.subr.mxu0 0.0
    %179 = vmatpush1.msra.mxu0 %v96
    %180 = vmatprep.subr.mxu0 0.0
    %181 = vmatpush1.msra.mxu0 %v97
    %182 = vmatprep.subr.mxu0 0.0
    %183 = vmatpush1.msra.mxu0 %v98
    %184 = vmatprep.subr.mxu0 0.0
    %185 = vmatpush1.msra.mxu0 %v99
    %186 = vmatprep.subr.mxu0 0.0
    %187 = vmatpush1.msra.mxu0 %v100
    %188 = vmatprep.subr.mxu0 0.0
    %189 = vmatpush1.msra.mxu0 %v101
    %190 = vmatprep.subr.mxu0 0.0
    %191 = vmatpush1.msra.mxu0 %v102
    %192 = vmatprep.subr.mxu0 0.0
    %193 = vmatpush1.msra.mxu0 %v103
    %194 = vmatprep.subr.mxu0 0.0
    %195 = vmatpush1.msra.mxu0 %v104
    %196 = vmatprep.subr.mxu0 0.0
    %197 = vmatpush1.msra.mxu0 %v105
    %198 = vmatprep.subr.mxu0 0.0
    %199 = vmatpush1.msra.mxu0 %v106
    %200 = vmatprep.subr.mxu0 0.0
    %201 = vmatpush1.msra.mxu0 %v107
    %202 = vmatprep.subr.mxu0 0.0
    %203 = vmatpush1.msra.mxu0 %v108
    %204 = vmatprep.subr.mxu0 0.0
    %205 = vmatpush1.msra.mxu0 %v109
    %206 = vmatprep.subr.mxu0 0.0
    %207 = vmatpush1.msra.mxu0 %v110
    %208 = vmatprep.subr.mxu0 0.0
    %209 = vmatpush1.msra.mxu0 %v111
    %210 = vmatprep.subr.mxu0 0.0
    %211 = vmatpush1.msra.mxu0 %v112
    %212 = vmatprep.subr.mxu0 0.0
    %213 = vmatpush1.msra.mxu0 %v113
    %214 = vmatprep.subr.mxu0 0.0
    %215 = vmatpush1.msra.mxu0 %v114
    %216 = vmatprep.subr.mxu0 0.0
    %217 = vmatpush1.msra.mxu0 %v115
    %218 = vmatprep.subr.mxu0 0.0
    %219 = vmatpush1.msra.mxu0 %v116
    %220 = vmatprep.mubr.f32.mxu0 %v66
    %221 = vmatmul.mubr.f32.gmra.mrb[0].mxu0 %v65
    %v222 = vpop.f32.mrb[0].mxu0
    %v223 = vadd.f32 %v154, %v222
    %v224 = vpop.f32.mrb[0].mxu0
    %225 = vmatprep.mubr.f32.mxu0 %v70
    %226 = vmatmul.mubr.f32.gmra.mrb[0].mxu0 %v69
    %v227 = vpop.f32.mrb[0].mxu0
    %v228 = vadd.f32 %v154, %v227
    %v229 = vpop.f32.mrb[0].mxu0
    %230 = vmatprep.mubr.f32.mxu0 %v74
    %231 = vmatmul.mubr.f32.gmra.mrb[0].mxu0 %v73
    %v232 = vpop.f32.mrb[0].mxu0
    %v233 = vadd.f32 %v154, %v232
    %v234 = vpop.f32.mrb[0].mxu0
    %235 = vmatprep.mubr.f32.mxu0 %v78
    %236 = vmatmul.mubr.f32.gmra.mrb[0].mxu0 %v77
    %v237 = vpop.f32.mrb[0].mxu0
    %v238 = vadd.f32 %v154, %v237
    %v239 = vpop.f32.mrb[0].mxu0
    %240 = vmatprep.mubr.f32.mxu0 %v82
    %241 = vmatmul.mubr.f32.gmra.mrb[0].mxu0 %v81
    %v242 = vpop.f32.mrb[0].mxu0
    %v243 = vadd.f32 %v154, %v242
    %v244 = vpop.f32.mrb[0].mxu0
    %245 = vdwg.mxu0
    %246 = vmatprep.subr.mxu0 0.0
    %247 = vmatpush1.msra.mxu0 %v117
    %248 = vmatprep.subr.mxu0 0.0
    %249 = vmatpush1.msra.mxu0 %v118
    %250 = vmatprep.subr.mxu0 0.0
    %251 = vmatpush1.msra.mxu0 %v119
    %252 = vmatprep.subr.mxu0 0.0
    %253 = vmatpush1.msra.mxu0 %v120
    %254 = vmatprep.subr.mxu0 0.0
    %255 = vmatpush1.msra.mxu0 %v121
    %256 = vmatprep.subr.mxu0 0.0
    %257 = vmatpush1.msra.mxu0 %v122
    %258 = vmatprep.subr.mxu0 0.0
    %259 = vmatpush1.msra.mxu0 %v123
    %260 = vmatprep.subr.mxu0 0.0
    %261 = vmatpush1.msra.mxu0 %v124
    %262 = vmatprep.subr.mxu0 0.0
    %263 = vmatpush1.msra.mxu0 %v125
    %264 = vmatprep.subr.mxu0 0.0
    %265 = vmatpush1.msra.mxu0 %v126
    %266 = vmatprep.subr.mxu0 0.0
    %267 = vmatpush1.msra.mxu0 %v127
    %268 = vmatprep.subr.mxu0 0.0
    %269 = vmatpush1.msra.mxu0 %v128
    %270 = vmatprep.subr.mxu0 0.0
    %271 = vmatpush1.msra.mxu0 %v129
    %272 = vmatprep.subr.mxu0 0.0
    %273 = vmatpush1.msra.mxu0 %v130
    %274 = vmatprep.subr.mxu0 0.0
    %275 = vmatpush1.msra.mxu0 %v131
    %276 = vmatprep.subr.mxu0 0.0
    %277 = vmatpush1.msra.mxu0 %v132
    %278 = vmatprep.subr.mxu0 0.0
    %279 = vmatpush1.msra.mxu0 %v133
    %280 = vmatprep.subr.mxu0 0.0
    %281 = vmatpush1.msra.mxu0 %v134
    %282 = vmatprep.subr.mxu0 0.0
    %283 = vmatpush1.msra.mxu0 %v135
    %284 = vmatprep.subr.mxu0 0.0
    %285 = vmatpush1.msra.mxu0 %v136
    %286 = vmatprep.subr.mxu0 0.0
    %287 = vmatpush1.msra.mxu0 %v137
    %288 = vmatprep.subr.mxu0 0.0
    %289 = vmatpush1.msra.mxu0 %v138
    %290 = vmatprep.subr.mxu0 0.0
    %291 = vmatpush1.msra.mxu0 %v139
    %292 = vmatprep.subr.mxu0 0.0
    %293 = vmatpush1.msra.mxu0 %v140
    %294 = vmatprep.subr.mxu0 0.0
    %295 = vmatpush1.msra.mxu0 %v141
    %296 = vmatprep.subr.mxu0 0.0
    %297 = vmatpush1.msra.mxu0 %v142
    %298 = vmatprep.subr.mxu0 0.0
    %299 = vmatpush1.msra.mxu0 %v143
    %300 = vmatprep.subr.mxu0 0.0
    %301 = vmatpush1.msra.mxu0 %v144
    %302 = vmatprep.subr.mxu0 0.0
    %303 = vmatpush1.msra.mxu0 %v145
    %304 = vmatprep.subr.mxu0 0.0
    %305 = vmatpush1.msra.mxu0 %v146
    %306 = vmatprep.subr.mxu0 0.0
    %307 = vmatpush1.msra.mxu0 %v147
    %308 = vmatprep.subr.mxu0 0.0
    %309 = vmatpush1.msra.mxu0 %v148
    %310 = vmatprep.mubr.f32.mxu0 %v68
    %311 = vmatmul.mubr.f32.gmra.mrb[0].mxu0 %v67
    %v312 = vpop.f32.mrb[0].mxu0
    %v313 = vadd.f32 %v223, %v312
    %v314 = vpop.f32.mrb[0].mxu0
    %315 = vmatprep.mubr.f32.mxu0 %v72
    %316 = vmatmul.mubr.f32.gmra.mrb[0].mxu0 %v71
    %v317 = vpop.f32.mrb[0].mxu0
    %v318 = vadd.f32 %v228, %v317
    %v319 = vpop.f32.mrb[0].mxu0
    %320 = vmatprep.mubr.f32.mxu0 %v76
    %321 = vmatmul.mubr.f32.gmra.mrb[0].mxu0 %v75
    %v322 = vpop.f32.mrb[0].mxu0
    %v323 = vadd.f32 %v233, %v322
    %v324 = vpop.f32.mrb[0].mxu0
    %325 = vmatprep.mubr.f32.mxu0 %v80
    %326 = vmatmul.mubr.f32.gmra.mrb[0].mxu0 %v79
    %v327 = vpop.f32.mrb[0].mxu0
    %v328 = vadd.f32 %v238, %v327
    %v329 = vpop.f32.mrb[0].mxu0
    %330 = vmatprep.mubr.f32.mxu0 %v84
    %331 = vmatmul.mubr.f32.gmra.mrb[0].mxu0 %v83
    %v332 = vpop.f32.mrb[0].mxu0
    %v333 = vadd.f32 %v243, %v332
    %v334 = vpop.f32.mrb[0].mxu0
    %335 = vdwg.mxu0
    %v336 = vld [vmem:[#allocation7] sm:$0xff]
    %v337 = vld [vmem:[#allocation7 + $0x8] sm:$0xff]
    %v338 = vld [vmem:[#allocation7 + $0x10] sm:$0xff]
    %v339 = vld [vmem:[#allocation7 + $0x18] sm:$0xff]
    %v340 = vld [vmem:[#allocation7 + $0x20] sm:$0xff]
    %v341 = vadd.f32 %v313, %v336
    %v342 = vadd.f32 %v318, %v337
    %v343 = vadd.f32 %v323, %v338
    %v344 = vadd.f32 %v328, %v339
    %v345 = vadd.f32 %v333, %v340
    %346 = vadd.xlane.f32.xlu0 %v341
    %v347 = vpop.xlane.xlu0 %346
    %348 = vadd.xlane.f32.xlu0 %v342
    %v349 = vpop.xlane.xlu0 %348
    %350 = vadd.xlane.f32.xlu0 %v343
    %v351 = vpop.xlane.xlu0 %350
    %352 = vadd.xlane.f32.xlu0 %v344
    %v353 = vpop.xlane.xlu0 %352
    %354 = vadd.xlane.f32.xlu0 %v345
    %v355 = vpop.xlane.xlu0 %354
    %v356 = vrcp.pop 128.0
    %v357 = vmul.f32 %v347, %v356
    %v358 = vmul.f32 %v349, %v356
    %v359 = vmul.f32 %v351, %v356
    %v360 = vmul.f32 %v353, %v356
    %v361 = vmul.f32 %v355, %v356
    %v362 = vsub.f32 %v341, %v357
    %v363 = vsub.f32 %v342, %v358
    %v364 = vsub.f32 %v343, %v359
    %v365 = vsub.f32 %v344, %v360
    %v366 = vsub.f32 %v345, %v361
    %v367 = vmul.f32 %v362, %v362
    %v368 = vmul.f32 %v363, %v363
    %v369 = vmul.f32 %v364, %v364
    %v370 = vmul.f32 %v365, %v365
    %v371 = vmul.f32 %v366, %v366
    %372 = vadd.xlane.f32.xlu0 %v367
    %v373 = vpop.xlane.xlu0 %372
    %374 = vadd.xlane.f32.xlu0 %v368
    %v375 = vpop.xlane.xlu0 %374
    %376 = vadd.xlane.f32.xlu0 %v369
    %v377 = vpop.xlane.xlu0 %376
    %378 = vadd.xlane.f32.xlu0 %v370
    %v379 = vpop.xlane.xlu0 %378
    %380 = vadd.xlane.f32.xlu0 %v371
    %v381 = vpop.xlane.xlu0 %380
    %v382 = vmul.f32 %v373, %v356
    %v383 = vmul.f32 %v375, %v356
    %v384 = vmul.f32 %v377, %v356
    %v385 = vmul.f32 %v379, %v356
    %v386 = vmul.f32 %v381, %v356
    %v387 = vadd.f32 %v382, 1e-12
    %v388 = vadd.f32 %v383, 1e-12
    %v389 = vadd.f32 %v384, 1e-12
    %v390 = vadd.f32 %v385, 1e-12
    %v391 = vadd.f32 %v386, 1e-12
    %v392 = vrsqrt.pop %v387
    %v393 = vrsqrt.pop %v388
    %v394 = vrsqrt.pop %v389
    %v395 = vrsqrt.pop %v390
    %v396 = vrsqrt.pop %v391
    %v397 = vmul.f32 %v362, %v392
    %v398 = vmul.f32 %v363, %v393
    %v399 = vmul.f32 %v364, %v394
    %v400 = vmul.f32 %v365, %v395
    %v401 = vmul.f32 %v366, %v396
    %v402 = vld [vmem:[%s4] sm:$0x1]
    %v404 = vlaneseq
    %v405 = vshrl.u32 %v404, 7
    %v406 = vsub.s32 0, %v405
    %v407 = vrot.slane %v402, %v406
    %v409 = vmul.f32 %v397, %v407
    %v410 = vmul.f32 %v398, %v407
    %v411 = vmul.f32 %v399, %v407
    %v412 = vmul.f32 %v400, %v407
    %v413 = vmul.f32 %v401, %v407
    %v414 = vld [vmem:[%s5] sm:$0x1]
    %v416 = vlaneseq
    %v417 = vshrl.u32 %v416, 7
    %v418 = vsub.s32 0, %v417
    %v419 = vrot.slane %v414, %v418
    %v421 = vadd.f32 %v409, %v419
    %v422 = vadd.f32 %v410, %v419
    %v423 = vadd.f32 %v411, %v419
    %v424 = vadd.f32 %v412, %v419
    %v425 = vadd.f32 %v413, %v419
    %426 = vst [vmem:[#allocation8] sm:$0xff] %v421
    %427 = vst [vmem:[#allocation8 + $0x8] sm:$0xff] %v422
    %428 = vst [vmem:[#allocation8 + $0x10] sm:$0xff] %v423
    %429 = vst [vmem:[#allocation8 + $0x18] sm:$0xff] %v424
    %430 = vst [vmem:[#allocation8 + $0x20] sm:$0xff] %v425
    // Predicated region
    $region38: #{tpu_custom_call.1} parent=1 // pred_check
      _
    $region39: #{tpu_custom_call.1} parent=1 // pred_check_branch
      %432 = sbr.rel (0) target = $region41
    $region40: #{tpu_custom_call.1} parent=1 // pred_region
      %s434 = ssub.s32 640, 640
      %435 = vsyncadd [#allocation4], %s434
      %s436 = sshll.u32 [#allocation8], 4
      %s437 = int_to_ptr.vmem [resolvable:$true] %s436
      %442 = dma.vmem_to_hbm [thread:$0]  %s437, 640, %s6, [#allocation4], 128, 128, 8
    $region41: #{tpu_custom_call.1} parent=1 // pred_fallthru
      _
    // Predicated region
    $region42: #{tpu_custom_call.1} parent=1 // pred_check
      _
    $region43: #{tpu_custom_call.1} parent=1 // pred_check_branch
      %444 = sbr.rel (0) target = $region45
    $region44: #{tpu_custom_call.1} parent=1 // pred_region
      %445 = dma.done [#allocation4], 640
    $region45: #{tpu_custom_call.1} parent=1 // pred_fallthru
      _
    %446 = vsyncpa [#allocation3], 1
    %447 = vsyncpa [#allocation6], 1
    %448 = vsyncpa [#allocation4], 1

</llo_original>
